<compile_context>
chip_gen: v5e
topology: v5e:2x2
jax: 0.10.0
libtpu: 0.0.40
codegen_flags: <defaults>
</compile_context>

<pallas_src>
import functools

import numpy as np
import jax
import jax.numpy as jnp
from jax import lax
from jax.experimental import pallas as pl
from jax.experimental.pallas import tpu as pltpu


def _bilinear_matrix(out_size, in_size):
    """Interpolation matrix matching F.upsample(mode='bilinear',
    align_corners=False): half-pixel centers, clamped to the border.
    # TODO(synk): very old torch F.upsample defaulted to align_corners=True;
    # validate once against the target torch version."""
    scale = in_size / out_size
    dst = np.arange(out_size, dtype=np.float64)
    src = np.clip((dst + 0.5) * scale - 0.5, 0.0, in_size - 1)
    lo = np.floor(src).astype(np.int64)
    hi = np.minimum(lo + 1, in_size - 1)
    frac = src - lo
    m = np.zeros((out_size, in_size), dtype=np.float32)
    m[np.arange(out_size), lo] += (1.0 - frac).astype(np.float32)
    m[np.arange(out_size), hi] += frac.astype(np.float32)
    return m


def _tensorcores_per_chip():
    """Heuristic: TPU v7x has 2 TensorCores per chip; v5e/v6e have 1."""
    try:
        kind = jax.devices()[0].device_kind.lower()
    except Exception:
        return 1
    return 2 if ("v7" in kind or "7x" in kind) else 1


# ----------------------------------------------------------------------------
# Kernel A: one grid step per batch element (used on multi-TC chips, e.g. v7x).
# ----------------------------------------------------------------------------
def _cam_kernel_batched(feat_ref, w_ref, b_ref, rk_ref, cmap_ref, cls_ref, wmap_ref):
    # feat_ref: (1, Cf, L)  bf16   backbone features, channel-major
    # w_ref:    (K, Cf)     bf16   fc weight
    # b_ref:    (K, 1)      f32    fc bias (column)
    # rk_ref:   (L, H*W)    bf16   kron(Rh, Rw)^T  (bilinear upsample)
    # cmap_ref: (1, K, H*W) f32
    # cls_ref:  (1, K, 1)   f32
    # wmap_ref: (1, 1, H*W) f32
    f = feat_ref[0]                                               # (Cf, L)

    # 1x1 conv == per-pixel linear layer (class-major, bf16 MXU, f32 acc).
    logits = jnp.dot(w_ref[...], f,
                     preferred_element_type=jnp.float32) + b_ref[...]    # (K, L)

    # softmax over classes (sublane axis).
    m = jnp.max(logits, axis=0, keepdims=True)
    e = jnp.exp(logits - m)
    inv = pl.reciprocal(jnp.sum(e, axis=0, keepdims=True), approx=True)
    cmap_s = e * inv                                              # (K, L)

    # cls_score: GAP commutes with the 1x1 conv -> mean of raw logits.
    cl = jnp.mean(logits, axis=1, keepdims=True)                  # (K, 1)
    cm = jnp.max(cl, axis=0, keepdims=True)
    ce = jnp.exp(cl - cm)
    cinv = pl.reciprocal(jnp.sum(ce, axis=0, keepdims=True), approx=True)
    cls = ce * cinv                                               # (K, 1)

    # single bf16 upsample matmul (kron(Rh, Rw)^T), f32 accumulation.
    cmap_up = jnp.dot(cmap_s.astype(jnp.bfloat16), rk_ref[...],
                      preferred_element_type=jnp.float32)         # (K, H*W)

    # weighted map: VPU multiply + sublane reduce (no second MXU dispatch).
    wmap = jnp.sum(cls * cmap_up, axis=0, keepdims=True)          # (1, H*W)

    cmap_ref[0] = cmap_up
    cls_ref[0] = cls
    wmap_ref[0] = wmap


# ----------------------------------------------------------------------------
# Kernel B: batch folded into lanes, single grid step (single-TC v5e/v6e).
# ----------------------------------------------------------------------------
def _cam_kernel_folded(feat_ref, w_ref, b_ref, rk_ref, cmap_ref, cls_ref, wmap_ref,
                       *, batch, l_small, hw):
    # feat_ref: (Cf, B*L)     bf16
    # w_ref:    (K, Cf)       bf16
    # b_ref:    (K, 1)        f32
    # rk_ref:   (B*L, B*HW)   bf16   block-diag kron(Rh, Rw)^T
    # cmap_ref: (K, B*HW)     f32
    # cls_ref:  (K, B)        f32
    # wmap_ref: (1, B*HW)     f32
    logits = jnp.dot(w_ref[...], feat_ref[...],
                     preferred_element_type=jnp.float32) + b_ref[...]    # (K, B*L)

    # per-pixel class softmax (classes on sublanes).
    m = jnp.max(logits, axis=0, keepdims=True)
    e = jnp.exp(logits - m)
    inv = pl.reciprocal(jnp.sum(e, axis=0, keepdims=True), approx=True)
    cmap_s = e * inv                                              # (K, B*L)

    # cls_score: per-batch mean of raw logits (GAP commutes with 1x1 conv).
    cl = jnp.concatenate(
        [jnp.mean(logits[:, b * l_small:(b + 1) * l_small], axis=1, keepdims=True)
         for b in range(batch)], axis=1)                          # (K, B)
    cm = jnp.max(cl, axis=0, keepdims=True)
    ce = jnp.exp(cl - cm)
    cinv = pl.reciprocal(jnp.sum(ce, axis=0, keepdims=True), approx=True)
    cls = ce * cinv                                               # (K, B)

    # single bf16 upsample matmul over the block-diagonal kron matrix.
    cmap_up = jnp.dot(cmap_s.astype(jnp.bfloat16), rk_ref[...],
                      preferred_element_type=jnp.float32)         # (K, B*HW)

    # weighted map per batch block: VPU multiply + sublane reduce.
    wmap = jnp.concatenate(
        [jnp.sum(cls[:, b:b + 1] * cmap_up[:, b * hw:(b + 1) * hw],
                 axis=0, keepdims=True)
         for b in range(batch)], axis=1)                          # (1, B*HW)

    cmap_ref[...] = cmap_up
    cls_ref[...] = cls
    wmap_ref[...] = wmap


def _backbone(x, conv_w, conv_b):
    # TODO(synk): the backbone is an arbitrary wrapped nn.Module in the original
    # code; it is represented here by one stride-2 3x3 conv + ReLU in plain JAX.
    # The bf16 cast is fused into the conv epilogue by XLA (no extra HBM pass).
    y = lax.conv_general_dilated(
        x, conv_w, window_strides=(2, 2), padding=((1, 1), (1, 1)),
        dimension_numbers=("NCHW", "OIHW", "NCHW"))
    return jax.nn.relu(y + conv_b[None, :, None, None]).astype(jnp.bfloat16)


def cam_forward(x, conv_w, conv_b, fc_w, fc_b, out_size=None):
    """x: NCHW float32. Returns (cmap (B,K,H,W), cls_score (B,K), weighted (B,H,W))."""
    B, _, Hin, Win = x.shape
    if out_size is None:
        out_size = (Hin, Win)
    H, W = out_size

    feat_nchw = _backbone(x, conv_w, conv_b)                    # (B, Cf, Hf, Wf) bf16
    _, Cf, Hf, Wf = feat_nchw.shape
    L, HW = Hf * Wf, H * W
    K = fc_w.shape[0]

    w = fc_w.astype(jnp.bfloat16)                               # (K, Cf)
    bias = fc_b.reshape(K, 1).astype(jnp.float32)
    # kron(Rh, Rw)^T : (Hf*Wf, H*W), align_corners=False semantics, bf16.
    rk_np = np.kron(_bilinear_matrix(H, Hf), _bilinear_matrix(W, Wf)).T

    if _tensorcores_per_chip() >= 2:
        # v7x: keep a parallel batch axis so each element lands on its own TC.
        feat = feat_nchw.reshape(B, Cf, L)
        rk = jnp.asarray(rk_np, dtype=jnp.bfloat16)             # (L, HW)
        cmap_f, cls_c, wmap_f = pl.pallas_call(
            _cam_kernel_batched,
            out_shape=(
                jax.ShapeDtypeStruct((B, K, HW), jnp.float32),
                jax.ShapeDtypeStruct((B, K, 1), jnp.float32),
                jax.ShapeDtypeStruct((B, 1, HW), jnp.float32),
            ),
            grid=(B,),
            in_specs=[
                pl.BlockSpec((1, Cf, L), lambda b: (b, 0, 0)),
                pl.BlockSpec((K, Cf), lambda b: (0, 0)),
                pl.BlockSpec((K, 1), lambda b: (0, 0)),
                pl.BlockSpec((L, HW), lambda b: (0, 0)),
            ],
            out_specs=(
                pl.BlockSpec((1, K, HW), lambda b: (b, 0, 0)),
                pl.BlockSpec((1, K, 1), lambda b: (b, 0, 0)),
                pl.BlockSpec((1, 1, HW), lambda b: (b, 0, 0)),
            ),
            compiler_params=pltpu.CompilerParams(
                dimension_semantics=("parallel",)),
        )(feat, w, bias, rk)
        cmap = cmap_f.reshape(B, K, H, W)
        cls_score = cls_c[:, :, 0]
        wmap = wmap_f.reshape(B, H, W)
    else:
        # v5e / v6e (single TC): fold the batch into the lane axis -> one grid
        # step, full 128-lane occupancy, no per-step pipeline overhead.
        feat = feat_nchw.reshape(B, Cf, L).transpose(1, 0, 2).reshape(Cf, B * L)
        rk_blk = jnp.asarray(
            np.kron(np.eye(B, dtype=np.float32), rk_np), dtype=jnp.bfloat16)
        kern = functools.partial(_cam_kernel_folded, batch=B, l_small=L, hw=HW)
        cmap_f, cls_c, wmap_f = pl.pallas_call(
            kern,
            out_shape=(
                jax.ShapeDtypeStruct((K, B * HW), jnp.float32),
                jax.ShapeDtypeStruct((K, B), jnp.float32),
                jax.ShapeDtypeStruct((1, B * HW), jnp.float32),
            ),
            grid=(1,),
            in_specs=[
                pl.BlockSpec((Cf, B * L), lambda i: (0, 0)),
                pl.BlockSpec((K, Cf), lambda i: (0, 0)),
                pl.BlockSpec((K, 1), lambda i: (0, 0)),
                pl.BlockSpec((B * L, B * HW), lambda i: (0, 0)),
            ],
            out_specs=(
                pl.BlockSpec((K, B * HW), lambda i: (0, 0)),
                pl.BlockSpec((K, B), lambda i: (0, 0)),
                pl.BlockSpec((1, B * HW), lambda i: (0, 0)),
            ),
            compiler_params=pltpu.CompilerParams(
                dimension_semantics=("arbitrary",)),
        )(feat, w, bias, rk_blk)
        cmap = cmap_f.reshape(K, B, H, W).transpose(1, 0, 2, 3)
        cls_score = cls_c.T
        wmap = wmap_f.reshape(B, H, W)

    return cmap, cls_score, wmap


def _reference(feat_nchw, fc_w, fc_b, rh, rw):
    """Pure-JAX mirror of the PyTorch forward (given the backbone features)."""
    hp = lax.Precision.HIGHEST
    feat = feat_nchw.astype(jnp.float32)
    logits = jnp.einsum('bchw,kc->bkhw', feat, fc_w, precision=hp) \
        + fc_b[None, :, None, None]
    cmap_s = jax.nn.softmax(logits, axis=1)                     # F.softmax dim=1 (4D)
    up = jnp.einsum('Hh,bkhw,Ww->bkHW', rh, cmap_s, rw, precision=hp)
    pooled = feat.mean(axis=(2, 3))
    cls = jax.nn.softmax(
        jnp.einsum('bc,kc->bk', pooled, fc_w, precision=hp) + fc_b, axis=1)
    wmap = (up * cls[:, :, None, None]).sum(axis=1)
    return up, cls, wmap


if __name__ == "__main__":
    B, Cin, Hin, Win = 2, 4, 16, 16     # x: (2, 4, 16, 16)
    Cf, K = 32, 8                       # fc.in_features, fc.out_features

    key = jax.random.PRNGKey(0)
    k1, k2, k3, k4, k5 = jax.random.split(key, 5)
    x = jax.random.normal(k1, (B, Cin, Hin, Win), jnp.float32)
    conv_w = 0.1 * jax.random.normal(k2, (Cf, Cin, 3, 3), jnp.float32)
    conv_b = 0.1 * jax.random.normal(k3, (Cf,), jnp.float32)
    fc_w = 0.1 * jax.random.normal(k4, (K, Cf), jnp.float32)
    fc_b = 0.1 * jax.random.normal(k5, (K,), jnp.float32)

    cmap, cls_score, weighted = jax.block_until_ready(
        cam_forward(x, conv_w, conv_b, fc_w, fc_b))

    # sanity check against a pure-JAX reference (kernel uses bf16 matmul
    # operands + approx reciprocals, so tolerance is looser than pure-f32).
    feat_nchw = _backbone(x, conv_w, conv_b)
    rh = jnp.asarray(_bilinear_matrix(Hin, feat_nchw.shape[2]))
    rw = jnp.asarray(_bilinear_matrix(Win, feat_nchw.shape[3]))
    ref_cmap, ref_cls, ref_wmap = _reference(feat_nchw, fc_w, fc_b, rh, rw)
    np.testing.assert_allclose(np.asarray(cmap), np.asarray(ref_cmap),
                               atol=5e-3, rtol=2e-2)
    np.testing.assert_allclose(np.asarray(cls_score), np.asarray(ref_cls),
                               atol=5e-3, rtol=2e-2)
    np.testing.assert_allclose(np.asarray(weighted), np.asarray(ref_wmap),
                               atol=5e-3, rtol=2e-2)

    assert cmap.shape == (B, K, Hin, Win)
    assert cls_score.shape == (B, K)
    assert weighted.shape == (B, Hin, Win)
    print("KERNEL_OK")
</pallas_src>

<mosaic_0001>
module attributes {stable_mosaic.version = 11 : i64} {
  func.func @_cam_kernel_folded(%arg0: i32, %arg1: memref<32x128xbf16, #tpu.memory_space<vmem>>, %arg2: memref<8x32xbf16, #tpu.memory_space<vmem>>, %arg3: memref<8x1xf32, #tpu.memory_space<vmem>>, %arg4: memref<128x512xbf16, #tpu.memory_space<vmem>>, %arg5: memref<8x512xf32, #tpu.memory_space<vmem>>, %arg6: memref<8x2xf32, #tpu.memory_space<vmem>>, %arg7: memref<1x512xf32, #tpu.memory_space<vmem>>) attributes {dimension_semantics = [#tpu.dimension_semantics<arbitrary>], iteration_bounds = array<i64: 1>, scalar_prefetch = 0 : i64, scratch_operands = 0 : i64, tpu.core_type = #tpu.core_type<tc>, window_params = [{pipeline_mode = #tpu.pipeline_mode<synchronous>, transform_indices = @transform_0, window_bounds = array<i64: 32, 128>}, {pipeline_mode = #tpu.pipeline_mode<synchronous>, transform_indices = @transform_1, window_bounds = array<i64: 8, 32>}, {pipeline_mode = #tpu.pipeline_mode<synchronous>, transform_indices = @transform_2, window_bounds = array<i64: 8, 1>}, {pipeline_mode = #tpu.pipeline_mode<synchronous>, transform_indices = @transform_3, window_bounds = array<i64: 128, 512>}, {pipeline_mode = #tpu.pipeline_mode<synchronous>, transform_indices = @transform_4, window_bounds = array<i64: 8, 512>}, {pipeline_mode = #tpu.pipeline_mode<synchronous>, transform_indices = @transform_5, window_bounds = array<i64: 8, 2>}, {pipeline_mode = #tpu.pipeline_mode<synchronous>, transform_indices = @transform_6, window_bounds = array<i64: 1, 512>}]} {
    %c0 = arith.constant 0 : index
    %c0_0 = arith.constant 0 : index
    %0 = vector.load %arg2[%c0, %c0_0] : memref<8x32xbf16, #tpu.memory_space<vmem>>, vector<8x32xbf16>
    %c0_1 = arith.constant 0 : index
    %c0_2 = arith.constant 0 : index
    %1 = vector.load %arg1[%c0_1, %c0_2] : memref<32x128xbf16, #tpu.memory_space<vmem>>, vector<32x128xbf16>
    %cst = arith.constant dense<0.000000e+00> : vector<8x128xf32>
    %2 = tpu.matmul %0, %1, %cst {dimension_numbers = #tpu.dot_dimension_numbers<[1], [0], [0], [1], [0, 0, 1, 1], [], []>} : vector<8x32xbf16>, vector<32x128xbf16>, vector<8x128xf32> -> vector<8x128xf32>
    %c0_3 = arith.constant 0 : index
    %c0_4 = arith.constant 0 : index
    %3 = vector.load %arg3[%c0_3, %c0_4] : memref<8x1xf32, #tpu.memory_space<vmem>>, vector<8x1xf32>
    %4 = vector.broadcast %3 : vector<8x1xf32> to vector<8x128xf32>
    %5 = arith.addf %2, %4 : vector<8x128xf32>
    %cst_5 = arith.constant dense<0xFF800000> : vector<128xf32>
    %6 = vector.multi_reduction <maximumf>, %5, %cst_5 [0] : vector<8x128xf32> to vector<128xf32>
    %7 = vector.shape_cast %6 : vector<128xf32> to vector<1x128xf32>
    %8 = vector.broadcast %7 : vector<1x128xf32> to vector<8x128xf32>
    %9 = arith.subf %5, %8 : vector<8x128xf32>
    %10 = math.exp %9 : vector<8x128xf32>
    %cst_6 = arith.constant dense<0.000000e+00> : vector<128xf32>
    %11 = vector.multi_reduction <add>, %10, %cst_6 [0] : vector<8x128xf32> to vector<128xf32>
    %12 = vector.shape_cast %11 : vector<128xf32> to vector<1x128xf32>
    %13 = tpu.reciprocal %12 {approx = true} : vector<1x128xf32> -> vector<1x128xf32>
    %14 = vector.broadcast %13 : vector<1x128xf32> to vector<8x128xf32>
    %15 = arith.mulf %10, %14 : vector<8x128xf32>
    %16 = vector.extract_strided_slice %5 {offsets = [0, 0], sizes = [8, 64], strides = [1, 1]} : vector<8x128xf32> to vector<8x64xf32>
    %cst_7 = arith.constant dense<0.000000e+00> : vector<8xf32>
    %17 = vector.multi_reduction <add>, %16, %cst_7 [1] : vector<8x64xf32> to vector<8xf32>
    %18 = vector.shape_cast %17 : vector<8xf32> to vector<8x1xf32>
    %cst_8 = arith.constant 6.400000e+01 : f32
    %19 = vector.broadcast %cst_8 : f32 to vector<8x1xf32>
    %20 = arith.divf %18, %19 : vector<8x1xf32>
    %21 = vector.extract_strided_slice %5 {offsets = [0, 64], sizes = [8, 64], strides = [1, 1]} : vector<8x128xf32> to vector<8x64xf32>
    %cst_9 = arith.constant dense<0.000000e+00> : vector<8xf32>
    %22 = vector.multi_reduction <add>, %21, %cst_9 [1] : vector<8x64xf32> to vector<8xf32>
    %23 = vector.shape_cast %22 : vector<8xf32> to vector<8x1xf32>
    %cst_10 = arith.constant 6.400000e+01 : f32
    %24 = vector.broadcast %cst_10 : f32 to vector<8x1xf32>
    %25 = arith.divf %23, %24 : vector<8x1xf32>
    %26 = tpu.concatenate %20, %25 in 1 : vector<8x1xf32>, vector<8x1xf32> -> vector<8x2xf32>
    %cst_11 = arith.constant dense<0xFF800000> : vector<2xf32>
    %27 = vector.multi_reduction <maximumf>, %26, %cst_11 [0] : vector<8x2xf32> to vector<2xf32>
    %28 = vector.shape_cast %27 : vector<2xf32> to vector<1x2xf32>
    %29 = vector.broadcast %28 : vector<1x2xf32> to vector<8x2xf32>
    %30 = arith.subf %26, %29 : vector<8x2xf32>
    %31 = math.exp %30 : vector<8x2xf32>
    %cst_12 = arith.constant dense<0.000000e+00> : vector<2xf32>
    %32 = vector.multi_reduction <add>, %31, %cst_12 [0] : vector<8x2xf32> to vector<2xf32>
    %33 = vector.shape_cast %32 : vector<2xf32> to vector<1x2xf32>
    %34 = tpu.reciprocal %33 {approx = true} : vector<1x2xf32> -> vector<1x2xf32>
    %35 = vector.broadcast %34 : vector<1x2xf32> to vector<8x2xf32>
    %36 = arith.mulf %31, %35 : vector<8x2xf32>
    %37 = arith.truncf %15 : vector<8x128xf32> to vector<8x128xbf16>
    %c0_13 = arith.constant 0 : index
    %c0_14 = arith.constant 0 : index
    %38 = vector.load %arg4[%c0_13, %c0_14] : memref<128x512xbf16, #tpu.memory_space<vmem>>, vector<128x512xbf16>
    %cst_15 = arith.constant dense<0.000000e+00> : vector<8x512xf32>
    %39 = tpu.matmul %37, %38, %cst_15 {dimension_numbers = #tpu.dot_dimension_numbers<[1], [0], [0], [1], [0, 0, 1, 1], [], []>} : vector<8x128xbf16>, vector<128x512xbf16>, vector<8x512xf32> -> vector<8x512xf32>
    %40 = vector.extract_strided_slice %36 {offsets = [0, 0], sizes = [8, 1], strides = [1, 1]} : vector<8x2xf32> to vector<8x1xf32>
    %41 = vector.extract_strided_slice %39 {offsets = [0, 0], sizes = [8, 256], strides = [1, 1]} : vector<8x512xf32> to vector<8x256xf32>
    %42 = vector.broadcast %40 : vector<8x1xf32> to vector<8x256xf32>
    %43 = arith.mulf %42, %41 : vector<8x256xf32>
    %cst_16 = arith.constant dense<0.000000e+00> : vector<256xf32>
    %44 = vector.multi_reduction <add>, %43, %cst_16 [0] : vector<8x256xf32> to vector<256xf32>
    %45 = vector.shape_cast %44 : vector<256xf32> to vector<1x256xf32>
    %46 = vector.extract_strided_slice %36 {offsets = [0, 1], sizes = [8, 1], strides = [1, 1]} : vector<8x2xf32> to vector<8x1xf32>
    %47 = vector.extract_strided_slice %39 {offsets = [0, 256], sizes = [8, 256], strides = [1, 1]} : vector<8x512xf32> to vector<8x256xf32>
    %48 = vector.broadcast %46 : vector<8x1xf32> to vector<8x256xf32>
    %49 = arith.mulf %48, %47 : vector<8x256xf32>
    %cst_17 = arith.constant dense<0.000000e+00> : vector<256xf32>
    %50 = vector.multi_reduction <add>, %49, %cst_17 [0] : vector<8x256xf32> to vector<256xf32>
    %51 = vector.shape_cast %50 : vector<256xf32> to vector<1x256xf32>
    %52 = tpu.concatenate %45, %51 in 1 : vector<1x256xf32>, vector<1x256xf32> -> vector<1x512xf32>
    %c0_18 = arith.constant 0 : index
    %c0_19 = arith.constant 0 : index
    %53 = vector.load %arg5[%c0_18, %c0_19] : memref<8x512xf32, #tpu.memory_space<vmem>>, vector<8x512xf32>
    tpu.vector_store %arg5[%c0_18, %c0_19], %39 {strides = array<i32>} : memref<8x512xf32, #tpu.memory_space<vmem>>, vector<8x512xf32>,
    %c0_20 = arith.constant 0 : index
    %c0_21 = arith.constant 0 : index
    %54 = vector.load %arg6[%c0_20, %c0_21] : memref<8x2xf32, #tpu.memory_space<vmem>>, vector<8x2xf32>
    tpu.vector_store %arg6[%c0_20, %c0_21], %36 {strides = array<i32>} : memref<8x2xf32, #tpu.memory_space<vmem>>, vector<8x2xf32>,
    %c0_22 = arith.constant 0 : index
    %c0_23 = arith.constant 0 : index
    %55 = vector.load %arg7[%c0_22, %c0_23] : memref<1x512xf32, #tpu.memory_space<vmem>>, vector<1x512xf32>
    tpu.vector_store %arg7[%c0_22, %c0_23], %52 {strides = array<i32>} : memref<1x512xf32, #tpu.memory_space<vmem>>, vector<1x512xf32>,
    return
  }
  func.func @transform_0(%arg0: i32) -> (i32, i32) {
    %c0_i32 = arith.constant 0 : i32
    %c0_i32_0 = arith.constant 0 : i32
    %c0_i32_1 = arith.constant 0 : i32
    return %c0_i32, %c0_i32_0 : i32, i32
  }
  func.func @transform_1(%arg0: i32) -> (i32, i32) {
    %c0_i32 = arith.constant 0 : i32
    %c0_i32_0 = arith.constant 0 : i32
    %c0_i32_1 = arith.constant 0 : i32
    return %c0_i32, %c0_i32_0 : i32, i32
  }
  func.func @transform_2(%arg0: i32) -> (i32, i32) {
    %c0_i32 = arith.constant 0 : i32
    %c0_i32_0 = arith.constant 0 : i32
    %c0_i32_1 = arith.constant 0 : i32
    return %c0_i32, %c0_i32_0 : i32, i32
  }
  func.func @transform_3(%arg0: i32) -> (i32, i32) {
    %c0_i32 = arith.constant 0 : i32
    %c0_i32_0 = arith.constant 0 : i32
    %c0_i32_1 = arith.constant 0 : i32
    return %c0_i32, %c0_i32_0 : i32, i32
  }
  func.func @transform_4(%arg0: i32) -> (i32, i32) {
    %c0_i32 = arith.constant 0 : i32
    %c0_i32_0 = arith.constant 0 : i32
    %c0_i32_1 = arith.constant 0 : i32
    return %c0_i32, %c0_i32_0 : i32, i32
  }
  func.func @transform_5(%arg0: i32) -> (i32, i32) {
    %c0_i32 = arith.constant 0 : i32
    %c0_i32_0 = arith.constant 0 : i32
    %c0_i32_1 = arith.constant 0 : i32
    return %c0_i32, %c0_i32_0 : i32, i32
  }
  func.func @transform_6(%arg0: i32) -> (i32, i32) {
    %c0_i32 = arith.constant 0 : i32
    %c0_i32_0 = arith.constant 0 : i32
    %c0_i32_1 = arith.constant 0 : i32
    return %c0_i32, %c0_i32_0 : i32, i32
  }
}

</mosaic_0001>

<llo_original>
// kernel: tpu_custom_call.1
$region0: #{tpu_custom_call.1}
  #allocation0 [shape = 'u32[]', space=smem, size = 0x4, offset = 0x4, fixed_abs, tag = 'smem constant byte address 0x4 - core index']
  #allocation1 [shape = 'u32[72,128]{1,0:T(1,128)}', space=vmem, size = 0x9000, scoped, tag = 'internal scratch']
  %s0 = inlined_call_operand.hbm [shape: bf16[32,128], index: 0, kind: input, shape index: {}]
  %s1 = inlined_call_operand.vmem [shape: bf16[8,32], index: 1, kind: input, shape index: {}]
  %s2 = inlined_call_operand.vmem [shape: f32[8,1], index: 2, kind: input, shape index: {}]
  %s3 = inlined_call_operand.hbm [shape: bf16[128,512], index: 3, kind: input, shape index: {}]
  %s4 = inlined_call_operand.hbm [shape: f32[8,512], index: 4, kind: output, shape index: {0}]
  %s5 = inlined_call_operand.vmem [shape: f32[8,2], index: 5, kind: output, shape index: {1}]
  %s6 = inlined_call_operand.hbm [shape: f32[1,512], index: 6, kind: output, shape index: {2}]
  %7 = xla_tuple %s4, %s5, %s6
  %s8 = sld [smem:[#allocation0]]
  $region50: #{tpu_custom_call.1} parent=0
    _
  %s10 = ssub.s32 1, %s8
  %s11 = scalar_select 0, %s10, %s8
  $region1: #{tpu_custom_call.1} parent=0
    #allocation2 [shape = 'u8[8192]{0}', space=vmem, size = 0x2000, scoped, tag = 'input window, operand 0, single buffered']
    #allocation3 [shape = 's32[1]{0}', space=sflag, size = 0x4, scoped, tag = 'scoped memory for tpu_custom_call.1']
    #allocation4 [shape = 's32[1]{0}', space=sflag, size = 0x4, scoped, tag = 'scoped memory for tpu_custom_call.1']
    #allocation5 [shape = 'u8[131072]{0}', space=vmem, size = 0x20000, scoped, tag = 'input window, operand 3, single buffered']
    #allocation6 [shape = 's32[1]{0}', space=sflag, size = 0x4, scoped, tag = 'scoped memory for tpu_custom_call.1']
    #allocation7 [shape = 'u8[16384]{0}', space=vmem, size = 0x4000, scoped, tag = 'output window, operand 0, single buffered']
    #allocation8 [shape = 'u8[2048]{0}', space=vmem, size = 0x800, scoped, tag = 'output window, operand 2, single buffered']
    #allocation9 [shape = 's32[1]{0}', space=sflag, size = 0x4, scoped, tag = 'scoped memory for tpu_custom_call.1']
    %12 = vsyncpa [#allocation3], 0
    %13 = vsyncpa [#allocation6], 0
    %14 = vsyncpa [#allocation4], 0
    %15 = vsyncpa [#allocation9], 0
    // Predicated region
    $region2: #{tpu_custom_call.1} parent=1 // pred_check
      _
    $region3: #{tpu_custom_call.1} parent=1 // pred_check_branch
      %17 = sbr.rel (0) target = $region5
    $region4: #{tpu_custom_call.1} parent=1 // pred_region
      %19 = vsyncadd [#allocation3], 0
      %s20 = sshll.u32 %s0, 4
      %s21 = int_to_ptr.hbm [resolvable:$true] %s20
      %s22 = sshll.u32 [#allocation2], 4
      %s23 = int_to_ptr.vmem [resolvable:$true] %s22
      %28 = dma.hbm_to_vmem [thread:$0]  %s21, 256, %s23, [#allocation3], 64, 64, 4
    $region5: #{tpu_custom_call.1} parent=1 // pred_fallthru
      _
    // Predicated region
    $region6: #{tpu_custom_call.1} parent=1 // pred_check
      _
    $region7: #{tpu_custom_call.1} parent=1 // pred_check_branch
      %30 = sbr.rel (0) target = $region9
    $region8: #{tpu_custom_call.1} parent=1 // pred_region
      _
    $region9: #{tpu_custom_call.1} parent=1 // pred_fallthru
      _
    // Predicated region
    $region10: #{tpu_custom_call.1} parent=1 // pred_check
      _
    $region11: #{tpu_custom_call.1} parent=1 // pred_check_branch
      %32 = sbr.rel (0) target = $region13
    $region12: #{tpu_custom_call.1} parent=1 // pred_region
      _
    $region13: #{tpu_custom_call.1} parent=1 // pred_fallthru
      _
    // Predicated region
    $region14: #{tpu_custom_call.1} parent=1 // pred_check
      _
    $region15: #{tpu_custom_call.1} parent=1 // pred_check_branch
      %34 = sbr.rel (0) target = $region17
    $region16: #{tpu_custom_call.1} parent=1 // pred_region
      %36 = vsyncadd [#allocation6], 0
      %s37 = sshll.u32 %s3, 4
      %s38 = int_to_ptr.hbm [resolvable:$true] %s37
      %s39 = sshll.u32 [#allocation5], 4
      %s40 = int_to_ptr.vmem [resolvable:$true] %s39
      %45 = dma.hbm_to_vmem [thread:$0]  %s38, 4096, %s40, [#allocation6], 256, 256, 16
    $region17: #{tpu_custom_call.1} parent=1 // pred_fallthru
      _
    // Predicated region
    $region18: #{tpu_custom_call.1} parent=1 // pred_check
      _
    $region19: #{tpu_custom_call.1} parent=1 // pred_check_branch
      %47 = sbr.rel (0) target = $region21
    $region20: #{tpu_custom_call.1} parent=1 // pred_region
      %49 = dma.done [#allocation3], 256
    $region21: #{tpu_custom_call.1} parent=1 // pred_fallthru
      _
    // Predicated region
    $region22: #{tpu_custom_call.1} parent=1 // pred_check
      _
    $region23: #{tpu_custom_call.1} parent=1 // pred_check_branch
      %51 = sbr.rel (0) target = $region25
    $region24: #{tpu_custom_call.1} parent=1 // pred_region
      %53 = dma.done [#allocation6], 4096
    $region25: #{tpu_custom_call.1} parent=1 // pred_fallthru
      _
    %v55 = vld [vmem:[%s1] sm:$0xf]
    %v56 = vld [vmem:[#allocation2] sm:$0xf]
    %v57 = vld [vmem:[#allocation2 + $0x4] sm:$0xf]
    %v58 = vld [vmem:[#allocation2 + $0x8] sm:$0xf]
    %v59 = vld [vmem:[#allocation2 + $0xc] sm:$0xf]
    %v60 = vld [vmem:[%s2] sm:$0xff]
    %62 = vset.pattern.permute.xlu0 0
    %63 = vperm.xlu0 %62, %v60
    %v64 = vpop.permute.xlu0 %63
    %v70 = vunpack.c.l.b16 %v56
    %v71 = vunpack.c.l.b16 %v57
    %v72 = vunpack.c.l.b16 %v58
    %v73 = vunpack.c.l.b16 %v59
    %v74 = vpack.c.b16 %v71, %v70
    %v75 = vpack.c.b16 %v73, %v72
    %vm78 = vcmask 261120
    %v80 = vsel %vm78, %v55, 0
    %82 = vmatpush.bf16.msra.mxu0 0
    %83 = vmatpush.bf16.msra.mxu0 0
    %84 = vmatpush.bf16.msra.mxu0 0
    %85 = vmatpush.bf16.msra.mxu0 0
    %86 = vmatpush.bf16.msra.mxu0 0
    %87 = vmatpush.bf16.msra.mxu0 0
    %88 = vmatpush.bf16.msra.mxu0 %v75
    %89 = vmatpush.bf16.msra.mxu0 %v74
    %90 = vmatmul.bf16.gmra.mxu0 %v80
    %v91 = vpop.f32.mrf.mxu0
    %v92 = vadd.f32 %v64, %v91
    %v93 = vpop.f32.mrf.mxu0
    %94 = vdwg.mxu0
    %v95 = vrot.slane %v92, 4
    %v96 = vmax.f32 %v92, %v95
    %v97 = vrot.slane %v96, 2
    %v98 = vmax.f32 %v96, %v97
    %v99 = vrot.slane %v98, 1
    %v100 = vmax.f32 %v98, %v99
    %v101 = vsub.f32 %v92, %v100
    %v102 = vmul.f32 %v101, 1.442695
    %v103 = vpow.pop %v102
    %v104 = vrot.slane %v103, 4
    %v105 = vadd.f32 %v103, %v104
    %v106 = vrot.slane %v105, 2
    %v107 = vadd.f32 %v105, %v106
    %v108 = vrot.slane %v107, 1
    %v109 = vadd.f32 %v107, %v108
    %v110 = vrcp.pop %v109
    %v111 = vmul.f32 %v103, %v110
    %vm112 = vcmask 523264
    %v113 = vsel %vm112, %v92, 0.0
    %114 = vadd.xlane.f32.xlu0 %v113
    %v115 = vpop.xlane.xlu0 %114
    %v116 = vrcp.pop 64.0
    %v117 = vmul.f32 64.0, %v116
    %v118 = vsub.f32 1.0, %v117
    %v119 = vmul.f32 %v116, %v118
    %v120 = vadd.f32 %v116, %v119
    %vm121 = vweird.f32 %v116
    %v122 = vsel %vm121, %v116, %v120
    %v123 = vmul.f32 %v115, %v122
    %125 = vrot.lane.b32.xlu0 %v92, 64
    %v126 = vpop.permute.xlu0 %125
    %v128 = vsel %vm112, %v126, 0.0
    %129 = vadd.xlane.f32.xlu0 %v128
    %v130 = vpop.xlane.xlu0 %129
    %v131 = vmul.f32 %v130, %v122
    %vm132 = vcmask 7168
    %v133 = vsel %vm132, %v123, %v131
    %vm134 = vcmask 15360
    %v135 = vsel %vm134, %v133, -inf
    %v136 = vrot.slane %v135, 4
    %v137 = vmax.f32 %v135, %v136
    %v138 = vrot.slane %v137, 2
    %v139 = vmax.f32 %v137, %v138
    %v140 = vrot.slane %v139, 1
    %v141 = vmax.f32 %v139, %v140
    %v142 = vsub.f32 %v133, %v141
    %v143 = vmul.f32 %v142, 1.442695
    %v144 = vpow.pop %v143
    %v145 = vsel %vm134, %v144, 0.0
    %v146 = vrot.slane %v145, 4
    %v147 = vadd.f32 %v145, %v146
    %v148 = vrot.slane %v147, 2
    %v149 = vadd.f32 %v147, %v148
    %v150 = vrot.slane %v149, 1
    %v151 = vadd.f32 %v149, %v150
    %v152 = vrcp.pop %v151
    %v153 = vmul.f32 %v144, %v152
    %v154 = vpack.c.bf16 %v111, %v111
    %v155 = vld [vmem:[#allocation5] sm:$0xff]
    %v156 = vld [vmem:[#allocation5 + $0x8] sm:$0xff]
    %v157 = vld [vmem:[#allocation5 + $0x10] sm:$0xff]
    %v158 = vld [vmem:[#allocation5 + $0x18] sm:$0xff]
    %v159 = vld [vmem:[#allocation5 + $0x20] sm:$0xff]
    %v160 = vld [vmem:[#allocation5 + $0x28] sm:$0xff]
    %v161 = vld [vmem:[#allocation5 + $0x30] sm:$0xff]
    %v162 = vld [vmem:[#allocation5 + $0x38] sm:$0xff]
    %v163 = vld [vmem:[#allocation5 + $0x40] sm:$0xff]
    %v164 = vld [vmem:[#allocation5 + $0x48] sm:$0xff]
    %v165 = vld [vmem:[#allocation5 + $0x50] sm:$0xff]
    %v166 = vld [vmem:[#allocation5 + $0x58] sm:$0xff]
    %v167 = vld [vmem:[#allocation5 + $0x60] sm:$0xff]
    %v168 = vld [vmem:[#allocation5 + $0x68] sm:$0xff]
    %v169 = vld [vmem:[#allocation5 + $0x70] sm:$0xff]
    %v170 = vld [vmem:[#allocation5 + $0x78] sm:$0xff]
    %v171 = vld [vmem:[#allocation5 + $0x80] sm:$0xff]
    %v172 = vld [vmem:[#allocation5 + $0x88] sm:$0xff]
    %v173 = vld [vmem:[#allocation5 + $0x90] sm:$0xff]
    %v174 = vld [vmem:[#allocation5 + $0x98] sm:$0xff]
    %v175 = vld [vmem:[#allocation5 + $0xa0] sm:$0xff]
    %v176 = vld [vmem:[#allocation5 + $0xa8] sm:$0xff]
    %v177 = vld [vmem:[#allocation5 + $0xb0] sm:$0xff]
    %v178 = vld [vmem:[#allocation5 + $0xb8] sm:$0xff]
    %v179 = vld [vmem:[#allocation5 + $0xc0] sm:$0xff]
    %v180 = vld [vmem:[#allocation5 + $0xc8] sm:$0xff]
    %v181 = vld [vmem:[#allocation5 + $0xd0] sm:$0xff]
    %v182 = vld [vmem:[#allocation5 + $0xd8] sm:$0xff]
    %v183 = vld [vmem:[#allocation5 + $0xe0] sm:$0xff]
    %v184 = vld [vmem:[#allocation5 + $0xe8] sm:$0xff]
    %v185 = vld [vmem:[#allocation5 + $0xf0] sm:$0xff]
    %v186 = vld [vmem:[#allocation5 + $0xf8] sm:$0xff]
    %v219 = vunpack.c.l.b16 %v155
    %v220 = vunpack.c.h.b16 %v155
    %v221 = vunpack.c.l.b16 %v156
    %v222 = vunpack.c.h.b16 %v156
    %v223 = vunpack.c.l.b16 %v157
    %v224 = vunpack.c.h.b16 %v157
    %v225 = vunpack.c.l.b16 %v158
    %v226 = vunpack.c.h.b16 %v158
    %v227 = vunpack.c.l.b16 %v159
    %v228 = vunpack.c.h.b16 %v159
    %v229 = vunpack.c.l.b16 %v160
    %v230 = vunpack.c.h.b16 %v160
    %v231 = vunpack.c.l.b16 %v161
    %v232 = vunpack.c.h.b16 %v161
    %v233 = vunpack.c.l.b16 %v162
    %v234 = vunpack.c.h.b16 %v162
    %v235 = vunpack.c.l.b16 %v163
    %v236 = vunpack.c.h.b16 %v163
    %v237 = vunpack.c.l.b16 %v164
    %v238 = vunpack.c.h.b16 %v164
    %v239 = vunpack.c.l.b16 %v165
    %v240 = vunpack.c.h.b16 %v165
    %v241 = vunpack.c.l.b16 %v166
    %v242 = vunpack.c.h.b16 %v166
    %v243 = vunpack.c.l.b16 %v167
    %v244 = vunpack.c.h.b16 %v167
    %v245 = vunpack.c.l.b16 %v168
    %v246 = vunpack.c.h.b16 %v168
    %v247 = vunpack.c.l.b16 %v169
    %v248 = vunpack.c.h.b16 %v169
    %v249 = vunpack.c.l.b16 %v170
    %v250 = vunpack.c.h.b16 %v170
    %v251 = vunpack.c.l.b16 %v171
    %v252 = vunpack.c.h.b16 %v171
    %v253 = vunpack.c.l.b16 %v172
    %v254 = vunpack.c.h.b16 %v172
    %v255 = vunpack.c.l.b16 %v173
    %v256 = vunpack.c.h.b16 %v173
    %v257 = vunpack.c.l.b16 %v174
    %v258 = vunpack.c.h.b16 %v174
    %v259 = vunpack.c.l.b16 %v175
    %v260 = vunpack.c.h.b16 %v175
    %v261 = vunpack.c.l.b16 %v176
    %v262 = vunpack.c.h.b16 %v176
    %v263 = vunpack.c.l.b16 %v177
    %v264 = vunpack.c.h.b16 %v177
    %v265 = vunpack.c.l.b16 %v178
    %v266 = vunpack.c.h.b16 %v178
    %v267 = vunpack.c.l.b16 %v179
    %v268 = vunpack.c.h.b16 %v179
    %v269 = vunpack.c.l.b16 %v180
    %v270 = vunpack.c.h.b16 %v180
    %v271 = vunpack.c.l.b16 %v181
    %v272 = vunpack.c.h.b16 %v181
    %v273 = vunpack.c.l.b16 %v182
    %v274 = vunpack.c.h.b16 %v182
    %v275 = vunpack.c.l.b16 %v183
    %v276 = vunpack.c.h.b16 %v183
    %v277 = vunpack.c.l.b16 %v184
    %v278 = vunpack.c.h.b16 %v184
    %v279 = vunpack.c.l.b16 %v185
    %v280 = vunpack.c.h.b16 %v185
    %v281 = vunpack.c.l.b16 %v186
    %v282 = vunpack.c.h.b16 %v186
    %v283 = vpack.c.b16 %v223, %v219
    %v284 = vpack.c.b16 %v224, %v220
    %v285 = vpack.c.b16 %v225, %v221
    %v286 = vpack.c.b16 %v226, %v222
    %v287 = vpack.c.b16 %v231, %v227
    %v288 = vpack.c.b16 %v232, %v228
    %v289 = vpack.c.b16 %v233, %v229
    %v290 = vpack.c.b16 %v234, %v230
    %v291 = vpack.c.b16 %v239, %v235
    %v292 = vpack.c.b16 %v240, %v236
    %v293 = vpack.c.b16 %v241, %v237
    %v294 = vpack.c.b16 %v242, %v238
    %v295 = vpack.c.b16 %v247, %v243
    %v296 = vpack.c.b16 %v248, %v244
    %v297 = vpack.c.b16 %v249, %v245
    %v298 = vpack.c.b16 %v250, %v246
    %v299 = vpack.c.b16 %v255, %v251
    %v300 = vpack.c.b16 %v256, %v252
    %v301 = vpack.c.b16 %v257, %v253
    %v302 = vpack.c.b16 %v258, %v254
    %v303 = vpack.c.b16 %v263, %v259
    %v304 = vpack.c.b16 %v264, %v260
    %v305 = vpack.c.b16 %v265, %v261
    %v306 = vpack.c.b16 %v266, %v262
    %v307 = vpack.c.b16 %v271, %v267
    %v308 = vpack.c.b16 %v272, %v268
    %v309 = vpack.c.b16 %v273, %v269
    %v310 = vpack.c.b16 %v274, %v270
    %v311 = vpack.c.b16 %v279, %v275
    %v312 = vpack.c.b16 %v280, %v276
    %v313 = vpack.c.b16 %v281, %v277
    %v314 = vpack.c.b16 %v282, %v278
    %347 = vmatpush.bf16.msra.mxu0 %v311
    %348 = vmatpush.bf16.msra.mxu0 %v307
    %349 = vmatpush.bf16.msra.mxu0 %v303
    %350 = vmatpush.bf16.msra.mxu0 %v299
    %351 = vmatpush.bf16.msra.mxu0 %v295
    %352 = vmatpush.bf16.msra.mxu0 %v291
    %353 = vmatpush.bf16.msra.mxu0 %v287
    %354 = vmatpush.bf16.msra.mxu0 %v283
    %355 = vmatmul.bf16.gmra.mxu0 %v154
    %v356 = vpop.f32.mrf.mxu0
    %v357 = vadd.f32 0.0, %v356
    %v358 = vpop.f32.mrf.mxu0
    %359 = vdwg.mxu0
    %360 = vmatpush.bf16.msra.mxu0 %v312
    %361 = vmatpush.bf16.msra.mxu0 %v308
    %362 = vmatpush.bf16.msra.mxu0 %v304
    %363 = vmatpush.bf16.msra.mxu0 %v300
    %364 = vmatpush.bf16.msra.mxu0 %v296
    %365 = vmatpush.bf16.msra.mxu0 %v292
    %366 = vmatpush.bf16.msra.mxu0 %v288
    %367 = vmatpush.bf16.msra.mxu0 %v284
    %368 = vmatmul.bf16.gmra.mxu0 %v154
    %v369 = vpop.f32.mrf.mxu0
    %v370 = vadd.f32 0.0, %v369
    %v371 = vpop.f32.mrf.mxu0
    %372 = vdwg.mxu0
    %373 = vmatpush.bf16.msra.mxu0 %v313
    %374 = vmatpush.bf16.msra.mxu0 %v309
    %375 = vmatpush.bf16.msra.mxu0 %v305
    %376 = vmatpush.bf16.msra.mxu0 %v301
    %377 = vmatpush.bf16.msra.mxu0 %v297
    %378 = vmatpush.bf16.msra.mxu0 %v293
    %379 = vmatpush.bf16.msra.mxu0 %v289
    %380 = vmatpush.bf16.msra.mxu0 %v285
    %381 = vmatmul.bf16.gmra.mxu0 %v154
    %v382 = vpop.f32.mrf.mxu0
    %v383 = vadd.f32 0.0, %v382
    %v384 = vpop.f32.mrf.mxu0
    %385 = vdwg.mxu0
    %386 = vmatpush.bf16.msra.mxu0 %v314
    %387 = vmatpush.bf16.msra.mxu0 %v310
    %388 = vmatpush.bf16.msra.mxu0 %v306
    %389 = vmatpush.bf16.msra.mxu0 %v302
    %390 = vmatpush.bf16.msra.mxu0 %v298
    %391 = vmatpush.bf16.msra.mxu0 %v294
    %392 = vmatpush.bf16.msra.mxu0 %v290
    %393 = vmatpush.bf16.msra.mxu0 %v286
    %394 = vmatmul.bf16.gmra.mxu0 %v154
    %v395 = vpop.f32.mrf.mxu0
    %v396 = vadd.f32 0.0, %v395
    %v397 = vpop.f32.mrf.mxu0
    %398 = vdwg.mxu0
    %400 = vset.pattern.permute.xlu0 0
    %401 = vperm.xlu0 %400, %v153
    %v402 = vpop.permute.xlu0 %401
    %v404 = vmul.f32 %v402, %v357
    %v405 = vmul.f32 %v402, %v370
    %v406 = vrot.slane %v404, 4
    %v407 = vadd.f32 %v404, %v406
    %v408 = vrot.slane %v407, 2
    %v409 = vadd.f32 %v407, %v408
    %v410 = vrot.slane %v409, 1
    %v411 = vadd.f32 %v409, %v410
    %v412 = vrot.slane %v405, 4
    %v413 = vadd.f32 %v405, %v412
    %v414 = vrot.slane %v413, 2
    %v415 = vadd.f32 %v413, %v414
    %v416 = vrot.slane %v415, 1
    %v417 = vadd.f32 %v415, %v416
    %418 = vset.pattern.permute.xlu0 1
    %419 = vperm.xlu0 %418, %v153
    %v420 = vpop.permute.xlu0 %419
    %v422 = vmul.f32 %v420, %v383
    %v423 = vmul.f32 %v420, %v396
    %v424 = vrot.slane %v422, 4
    %v425 = vadd.f32 %v422, %v424
    %v426 = vrot.slane %v425, 2
    %v427 = vadd.f32 %v425, %v426
    %v428 = vrot.slane %v427, 1
    %v429 = vadd.f32 %v427, %v428
    %v430 = vrot.slane %v423, 4
    %v431 = vadd.f32 %v423, %v430
    %v432 = vrot.slane %v431, 2
    %v433 = vadd.f32 %v431, %v432
    %v434 = vrot.slane %v433, 1
    %v435 = vadd.f32 %v433, %v434
    %436 = vst [vmem:[#allocation7] sm:$0xff] %v357
    %437 = vst [vmem:[#allocation7 + $0x8] sm:$0xff] %v370
    %438 = vst [vmem:[#allocation7 + $0x10] sm:$0xff] %v383
    %439 = vst [vmem:[#allocation7 + $0x18] sm:$0xff] %v396
    %440 = vst.msk [vmem:[%s5] sm:$0xff] %vm134, %v153
    %v445 = vrot.slane %v417, 7
    %v446 = vrot.slane %v429, 6
    %v447 = vrot.slane %v435, 5
    %vm448 = vcmask 1040384
    %v449 = vsel %vm448, %v411, %v445
    %vm450 = vcmask 1042434
    %v451 = vsel %vm450, %v446, %v447
    %vm452 = vcmask 1041408
    %v453 = vsel %vm452, %v449, %v451
    %v455 = vlaneseq
    %vm456 = vcmp.ge.s32.totalorder %v455, 0
    %vm457 = vcmp.lt.s32.totalorder %v455, 512
    %vm458 = vmand %vm456, %vm457
    %459 = vst.msk [vmem:[#allocation8] sm:$0xf] %vm458, %v453
    // Predicated region
    $region26: #{tpu_custom_call.1} parent=1 // pred_check
      _
    $region27: #{tpu_custom_call.1} parent=1 // pred_check_branch
      %461 = sbr.rel (0) target = $region29
    $region28: #{tpu_custom_call.1} parent=1 // pred_region
      %463 = vsyncadd [#allocation4], 0
      %s465 = sshll.u32 [#allocation7], 4
      %s466 = int_to_ptr.vmem [resolvable:$true] %s465
      %s467 = sshll.u32 %s4, 4
      %s468 = int_to_ptr.hbm [resolvable:$true] %s467
      %470 = dma.vmem_to_hbm [thread:$0]  %s466, 512, %s468, [#allocation4]
    $region29: #{tpu_custom_call.1} parent=1 // pred_fallthru
      _
    // Predicated region
    $region30: #{tpu_custom_call.1} parent=1 // pred_check
      _
    $region31: #{tpu_custom_call.1} parent=1 // pred_check_branch
      %472 = sbr.rel (0) target = $region33
    $region32: #{tpu_custom_call.1} parent=1 // pred_region
      _
    $region33: #{tpu_custom_call.1} parent=1 // pred_fallthru
      _
    // Predicated region
    $region34: #{tpu_custom_call.1} parent=1 // pred_check
      _
    $region35: #{tpu_custom_call.1} parent=1 // pred_check_branch
      %474 = sbr.rel (0) target = $region37
    $region36: #{tpu_custom_call.1} parent=1 // pred_region
      %476 = vsyncadd [#allocation9], 0
      %s478 = sshll.u32 [#allocation8], 4
      %s479 = int_to_ptr.vmem [resolvable:$true] %s478
      %s480 = sshll.u32 %s6, 4
      %s481 = int_to_ptr.hbm [resolvable:$true] %s480
      %483 = dma.vmem_to_hbm [thread:$0]  %s479, 64, %s481, [#allocation9]
    $region37: #{tpu_custom_call.1} parent=1 // pred_fallthru
      _
    // Predicated region
    $region38: #{tpu_custom_call.1} parent=1 // pred_check
      _
    $region39: #{tpu_custom_call.1} parent=1 // pred_check_branch
      %485 = sbr.rel (0) target = $region41
    $region40: #{tpu_custom_call.1} parent=1 // pred_region
      %487 = dma.done [#allocation4], 512
    $region41: #{tpu_custom_call.1} parent=1 // pred_fallthru
      _
    // Predicated region
    $region42: #{tpu_custom_call.1} parent=1 // pred_check
      _
    $region43: #{tpu_custom_call.1} parent=1 // pred_check_branch
      %489 = sbr.rel (0) target = $region45
    $region44: #{tpu_custom_call.1} parent=1 // pred_region
      _
    $region45: #{tpu_custom_call.1} parent=1 // pred_fallthru
      _
    // Predicated region
    $region46: #{tpu_custom_call.1} parent=1 // pred_check
      _
    $region47: #{tpu_custom_call.1} parent=1 // pred_check_branch
      %491 = sbr.rel (0) target = $region49
    $region48: #{tpu_custom_call.1} parent=1 // pred_region
      %493 = dma.done [#allocation9], 64
    $region49: #{tpu_custom_call.1} parent=1 // pred_fallthru
      _
    %494 = vsyncpa [#allocation3], 1
    %495 = vsyncpa [#allocation6], 1
    %496 = vsyncpa [#allocation4], 1
    %497 = vsyncpa [#allocation9], 1

</llo_original>
